<compile_context>
chip_gen: v7x
topology: tpu7x:2x2x1
jax: 0.10.0
libtpu: 0.0.40
codegen_flags: <defaults>
</compile_context>

<pallas_src>
import jax
import jax.numpy as jnp
from jax import lax
from jax.experimental import pallas as pl
from jax.experimental.pallas import tpu as pltpu


def _eaf_kernel(x_ref, wk_ref, wv_ref, o_ref):
    # x_ref:  (bb, N, D)  batch slab (full N, full D — no padding)
    # wk_ref: (S, D)      mk.weight
    # wv_ref: (D, S)      mv.weight
    # o_ref:  (bb, N, D)
    bb = x_ref.shape[0]
    wk = wk_ref[...]          # (S, D) — resident across the whole grid
    wv = wv_ref[...]          # (D, S)

    def body(i, carry):
        x_i = x_ref[i]        # (N, D) — 2-D slice along the leading (untiled) dim

        # (N, D) . (S, D)^T  -> (N, S) on the MXU, f32 accumulation.
        attn = lax.dot_general(
            x_i, wk,
            dimension_numbers=(((1,), (1,)), ((), ())),
            preferred_element_type=jnp.float32,
        )

        # Softmax over the token axis (torch dim=1 of (B, N, S)).
        m = jnp.max(attn, axis=0, keepdims=True)
        e = jnp.exp(attn - m)
        p = e * pl.reciprocal(jnp.sum(e, axis=0, keepdims=True), approx=False)

        # L1 normalization over S (torch dim=2).
        p = p * pl.reciprocal(jnp.sum(p, axis=1, keepdims=True), approx=False)

        # (N, S) . (D, S)^T -> (N, D).
        out_i = lax.dot_general(
            p, wv,
            dimension_numbers=(((1,), (1,)), ((), ())),
            preferred_element_type=jnp.float32,
        )
        o_ref[i] = out_i.astype(o_ref.dtype)
        return carry

    # Short, statically-bounded loop: unroll so the LLO scheduler sees everything.
    lax.fori_loop(0, bb, body, 0, unroll=True)


def eaf_forward(x, wk, wv, *, target_steps=4):
    """x: (B, N, D); wk: (S, D) == mk.weight; wv: (D, S) == mv.weight."""
    B, N, D = x.shape
    S = wk.shape[0]

    # ~4 grid steps over the batch: >=2 "parallel" steps per v7x TensorCore so
    # megacore sharding always engages and per-core DMA pipelining has work to
    # overlap; near-neutral on single-TC v5e/v6e. The last block may over-run B
    # (e.g. B=50 -> bb=13, grid=4): over-run rows read unspecified data, compute
    # garbage per-row, and their stores are discarded by Pallas — safe because
    # there is no cross-batch reduction anywhere in the math.
    steps = max(1, min(target_steps, B))
    bb = pl.cdiv(B, steps)
    grid = (pl.cdiv(B, bb),)

    return pl.pallas_call(
        _eaf_kernel,
        out_shape=jax.ShapeDtypeStruct((B, N, D), x.dtype),
        grid_spec=pltpu.PrefetchScalarGridSpec(
            num_scalar_prefetch=0,
            grid=grid,
            in_specs=[
                # Full-dim blocks in N and D: last two dims equal the array dims,
                # so no (8,128) padding and no wrapper pad/slice HBM round-trips.
                pl.BlockSpec((bb, N, D), lambda g: (g, 0, 0)),
                pl.BlockSpec((S, D), lambda g: (0, 0)),
                pl.BlockSpec((D, S), lambda g: (0, 0)),
            ],
            out_specs=pl.BlockSpec((bb, N, D), lambda g: (g, 0, 0)),
        ),
        compiler_params=pltpu.CompilerParams(
            dimension_semantics=("parallel",),
            # bb ~= ceil(B/4) keeps double-buffered blocks well under the v5e
            # 16 MiB scoped default; 32 MiB gives headroom for compiler temps.
            vmem_limit_bytes=32 << 20,
        ),
    )(x, wk, wv)


def eaf_reference(x, wk, wv):
    """Pure-JAX reference mirroring the PyTorch ExternalAttention."""
    attn = jnp.einsum("bnd,sd->bns", x, wk)
    attn = jax.nn.softmax(attn, axis=1)                  # softmax over tokens
    attn = attn / jnp.sum(attn, axis=2, keepdims=True)   # L1 normalize over S
    return jnp.einsum("bns,ds->bnd", attn, wv)


if __name__ == "__main__":
    key = jax.random.PRNGKey(0)
    k_img, k_ev, k_imu, k_in, k_wk, k_wv = jax.random.split(key, 6)

    # Small shapes consistent with the module:
    # input_dims = (img_dim, ev_dim, imu_dim) -> d_model = sum, hidden S = 8.
    img_dim, ev_dim, imu_dim = 16, 8, 8
    D = img_dim + ev_dim + imu_dim      # 32 (torch version uses 512)
    S = 8                               # hidden_dim in EAF.__init__
    # Odd B exercises the over-run edge block (grid=3, bb=2, 6>5 rows);
    # N=15 (not 8-aligned) exercises the full-dim-block path with no padding,
    # matching the torch-scale N=49 layout situation.
    B, N = 5, 15

    # The three module inputs (ignored by EAF.forward, kept for fidelity).
    img_x = jax.random.normal(k_img, (B, img_dim), dtype=jnp.float32)
    ev_x = jax.random.normal(k_ev, (B, ev_dim), dtype=jnp.float32)
    imu_x = jax.random.normal(k_imu, (B, imu_dim), dtype=jnp.float32)
    del img_x, ev_x, imu_x  # forward() discards them, exactly like the PyTorch code

    # Internal random input (stands in for torch.randn(50, 49, 512)),
    # generated deterministically instead of a fresh randn each call.
    x = jax.random.normal(k_in, (B, N, D), dtype=jnp.float32)

    # Deterministic weight init (nn.Linear(..., bias=False) shapes):
    #   mk.weight: (S, D), mv.weight: (D, S)
    wk = jax.random.normal(k_wk, (S, D), dtype=jnp.float32) * (1.0 / jnp.sqrt(D))
    wv = jax.random.normal(k_wv, (D, S), dtype=jnp.float32) * (1.0 / jnp.sqrt(S))

    out = jax.block_until_ready(eaf_forward(x, wk, wv))

    ref = eaf_reference(x, wk, wv)
    assert out.shape == (B, N, D)
    assert jnp.allclose(out, ref, atol=1e-5, rtol=1e-5), "mismatch vs reference"

    print("KERNEL_OK")
</pallas_src>

<mosaic_0001>
module attributes {stable_mosaic.version = 11 : i64} {
  func.func @_eaf_kernel(%arg0: i32, %arg1: memref<2x15x32xf32, #tpu.memory_space<vmem>>, %arg2: memref<8x32xf32, #tpu.memory_space<vmem>>, %arg3: memref<32x8xf32, #tpu.memory_space<vmem>>, %arg4: memref<2x15x32xf32, #tpu.memory_space<vmem>>) attributes {dimension_semantics = [#tpu.dimension_semantics<parallel>], iteration_bounds = array<i64: 3>, scalar_prefetch = 0 : i64, scratch_operands = 0 : i64, tpu.core_type = #tpu.core_type<tc>, window_params = [{transform_indices = @transform_0, window_bounds = array<i64: 2, 15, 32>}, {pipeline_mode = #tpu.pipeline_mode<synchronous>, transform_indices = @transform_1, window_bounds = array<i64: 8, 32>}, {pipeline_mode = #tpu.pipeline_mode<synchronous>, transform_indices = @transform_2, window_bounds = array<i64: 32, 8>}, {transform_indices = @transform_3, window_bounds = array<i64: 2, 15, 32>}]} {
    %c0 = arith.constant 0 : index
    %c0_0 = arith.constant 0 : index
    %0 = vector.load %arg2[%c0, %c0_0] : memref<8x32xf32, #tpu.memory_space<vmem>>, vector<8x32xf32>
    %c0_1 = arith.constant 0 : index
    %c0_2 = arith.constant 0 : index
    %1 = vector.load %arg3[%c0_1, %c0_2] : memref<32x8xf32, #tpu.memory_space<vmem>>, vector<32x8xf32>
    %c0_i32 = arith.constant 0 : i32
    %2 = arith.index_cast %c0_i32 : i32 to index
    %c0_3 = arith.constant 0 : index
    %c0_4 = arith.constant 0 : index
    %3 = vector.load %arg1[%2, %c0_3, %c0_4] : memref<2x15x32xf32, #tpu.memory_space<vmem>>, vector<1x15x32xf32>
    %4 = vector.shape_cast %3 : vector<1x15x32xf32> to vector<15x32xf32>
    %cst = arith.constant dense<0.000000e+00> : vector<15x8xf32>
    %5 = tpu.matmul %4, %0, %cst {dimension_numbers = #tpu.dot_dimension_numbers<[1], [1], [0], [0], [0, 0, 1, 0], [], []>} : vector<15x32xf32>, vector<8x32xf32>, vector<15x8xf32> -> vector<15x8xf32>
    %cst_5 = arith.constant dense<0xFF800000> : vector<8xf32>
    %6 = vector.multi_reduction <maximumf>, %5, %cst_5 [0] : vector<15x8xf32> to vector<8xf32>
    %7 = vector.shape_cast %6 : vector<8xf32> to vector<1x8xf32>
    %8 = vector.broadcast %7 : vector<1x8xf32> to vector<15x8xf32>
    %9 = arith.subf %5, %8 : vector<15x8xf32>
    %10 = math.exp %9 : vector<15x8xf32>
    %cst_6 = arith.constant dense<0.000000e+00> : vector<8xf32>
    %11 = vector.multi_reduction <add>, %10, %cst_6 [0] : vector<15x8xf32> to vector<8xf32>
    %12 = vector.shape_cast %11 : vector<8xf32> to vector<1x8xf32>
    %13 = tpu.reciprocal %12 : vector<1x8xf32> -> vector<1x8xf32>
    %14 = vector.broadcast %13 : vector<1x8xf32> to vector<15x8xf32>
    %15 = arith.mulf %10, %14 : vector<15x8xf32>
    %cst_7 = arith.constant dense<0.000000e+00> : vector<15xf32>
    %16 = vector.multi_reduction <add>, %15, %cst_7 [1] : vector<15x8xf32> to vector<15xf32>
    %17 = vector.shape_cast %16 : vector<15xf32> to vector<15x1xf32>
    %18 = tpu.reciprocal %17 : vector<15x1xf32> -> vector<15x1xf32>
    %19 = vector.broadcast %18 : vector<15x1xf32> to vector<15x8xf32>
    %20 = arith.mulf %15, %19 : vector<15x8xf32>
    %cst_8 = arith.constant dense<0.000000e+00> : vector<15x32xf32>
    %21 = tpu.matmul %20, %1, %cst_8 {dimension_numbers = #tpu.dot_dimension_numbers<[1], [1], [0], [0], [0, 0, 1, 0], [], []>} : vector<15x8xf32>, vector<32x8xf32>, vector<15x32xf32> -> vector<15x32xf32>
    %22 = arith.index_cast %c0_i32 : i32 to index
    %c0_9 = arith.constant 0 : index
    %c0_10 = arith.constant 0 : index
    %23 = vector.load %arg4[%22, %c0_9, %c0_10] : memref<2x15x32xf32, #tpu.memory_space<vmem>>, vector<1x15x32xf32>
    %24 = vector.shape_cast %23 : vector<1x15x32xf32> to vector<15x32xf32>
    %25 = vector.shape_cast %21 : vector<15x32xf32> to vector<1x15x32xf32>
    tpu.vector_store %arg4[%22, %c0_9, %c0_10], %25 {strides = array<i32>} : memref<2x15x32xf32, #tpu.memory_space<vmem>>, vector<1x15x32xf32>,
    %c1_i32 = arith.constant 1 : i32
    %26 = arith.index_cast %c1_i32 : i32 to index
    %c0_11 = arith.constant 0 : index
    %c0_12 = arith.constant 0 : index
    %27 = vector.load %arg1[%26, %c0_11, %c0_12] : memref<2x15x32xf32, #tpu.memory_space<vmem>>, vector<1x15x32xf32>
    %28 = vector.shape_cast %27 : vector<1x15x32xf32> to vector<15x32xf32>
    %cst_13 = arith.constant dense<0.000000e+00> : vector<15x8xf32>
    %29 = tpu.matmul %28, %0, %cst_13 {dimension_numbers = #tpu.dot_dimension_numbers<[1], [1], [0], [0], [0, 0, 1, 0], [], []>} : vector<15x32xf32>, vector<8x32xf32>, vector<15x8xf32> -> vector<15x8xf32>
    %cst_14 = arith.constant dense<0xFF800000> : vector<8xf32>
    %30 = vector.multi_reduction <maximumf>, %29, %cst_14 [0] : vector<15x8xf32> to vector<8xf32>
    %31 = vector.shape_cast %30 : vector<8xf32> to vector<1x8xf32>
    %32 = vector.broadcast %31 : vector<1x8xf32> to vector<15x8xf32>
    %33 = arith.subf %29, %32 : vector<15x8xf32>
    %34 = math.exp %33 : vector<15x8xf32>
    %cst_15 = arith.constant dense<0.000000e+00> : vector<8xf32>
    %35 = vector.multi_reduction <add>, %34, %cst_15 [0] : vector<15x8xf32> to vector<8xf32>
    %36 = vector.shape_cast %35 : vector<8xf32> to vector<1x8xf32>
    %37 = tpu.reciprocal %36 : vector<1x8xf32> -> vector<1x8xf32>
    %38 = vector.broadcast %37 : vector<1x8xf32> to vector<15x8xf32>
    %39 = arith.mulf %34, %38 : vector<15x8xf32>
    %cst_16 = arith.constant dense<0.000000e+00> : vector<15xf32>
    %40 = vector.multi_reduction <add>, %39, %cst_16 [1] : vector<15x8xf32> to vector<15xf32>
    %41 = vector.shape_cast %40 : vector<15xf32> to vector<15x1xf32>
    %42 = tpu.reciprocal %41 : vector<15x1xf32> -> vector<15x1xf32>
    %43 = vector.broadcast %42 : vector<15x1xf32> to vector<15x8xf32>
    %44 = arith.mulf %39, %43 : vector<15x8xf32>
    %cst_17 = arith.constant dense<0.000000e+00> : vector<15x32xf32>
    %45 = tpu.matmul %44, %1, %cst_17 {dimension_numbers = #tpu.dot_dimension_numbers<[1], [1], [0], [0], [0, 0, 1, 0], [], []>} : vector<15x8xf32>, vector<32x8xf32>, vector<15x32xf32> -> vector<15x32xf32>
    %46 = arith.index_cast %c1_i32 : i32 to index
    %c0_18 = arith.constant 0 : index
    %c0_19 = arith.constant 0 : index
    %47 = vector.load %arg4[%46, %c0_18, %c0_19] : memref<2x15x32xf32, #tpu.memory_space<vmem>>, vector<1x15x32xf32>
    %48 = vector.shape_cast %47 : vector<1x15x32xf32> to vector<15x32xf32>
    %49 = vector.shape_cast %45 : vector<15x32xf32> to vector<1x15x32xf32>
    tpu.vector_store %arg4[%46, %c0_18, %c0_19], %49 {strides = array<i32>} : memref<2x15x32xf32, #tpu.memory_space<vmem>>, vector<1x15x32xf32>,
    %c2_i32 = arith.constant 2 : i32
    return
  }
  func.func @transform_0(%arg0: i32) -> (i32, i32, i32) {
    %c0_i32 = arith.constant 0 : i32
    %c0_i32_0 = arith.constant 0 : i32
    %c0_i32_1 = arith.constant 0 : i32
    return %arg0, %c0_i32, %c0_i32_0 : i32, i32, i32
  }
  func.func @transform_1(%arg0: i32) -> (i32, i32) {
    %c0_i32 = arith.constant 0 : i32
    %c0_i32_0 = arith.constant 0 : i32
    %c0_i32_1 = arith.constant 0 : i32
    return %c0_i32, %c0_i32_0 : i32, i32
  }
  func.func @transform_2(%arg0: i32) -> (i32, i32) {
    %c0_i32 = arith.constant 0 : i32
    %c0_i32_0 = arith.constant 0 : i32
    %c0_i32_1 = arith.constant 0 : i32
    return %c0_i32, %c0_i32_0 : i32, i32
  }
  func.func @transform_3(%arg0: i32) -> (i32, i32, i32) {
    %c0_i32 = arith.constant 0 : i32
    %c0_i32_0 = arith.constant 0 : i32
    %c0_i32_1 = arith.constant 0 : i32
    return %arg0, %c0_i32, %c0_i32_0 : i32, i32, i32
  }
}

</mosaic_0001>

<llo_original>
// kernel: tpu_custom_call.1
$region0: #{tpu_custom_call.1}
  #allocation0 [shape = 'u32[]', space=smem, size = 0x4, offset = 0x4, fixed_abs, tag = 'smem constant byte address 0x4 - core index']
  #allocation1 [shape = 'u32[144,128]{1,0:T(1,128)}', space=vmem, size = 0x12000, scoped, tag = 'internal scratch']
  %s0 = inlined_call_operand.hbm [shape: f32[5,15,32], index: 0, kind: input, shape index: {}]
  %s1 = inlined_call_operand.vmem [shape: f32[8,32], index: 1, kind: input, shape index: {}]
  %s2 = inlined_call_operand.vmem [shape: f32[32,8], index: 2, kind: input, shape index: {}]
  %s3 = inlined_call_operand.hbm [shape: f32[5,15,32], index: 3, kind: output, shape index: {}]
  %s4 = sld [smem:[#allocation0]]
  $region49: #{tpu_custom_call.1} parent=0
    _
  %s6 = ssub.s32 1, %s4
  %s7 = scalar_select 0, %s6, %s4
  $region1: #{tpu_custom_call.1} parent=0
    #allocation2 [shape = 'u8[32768]{0}', space=vmem, size = 0x8000, scoped, tag = 'input window, operand 0']
    #allocation3 [shape = 's32[2]{0}', space=sflag, size = 0x8, scoped, tag = 'scoped memory for tpu_custom_call.1']
    #allocation4 [shape = 's32[2]{0}', space=sflag, size = 0x8, scoped, tag = 'scoped memory for tpu_custom_call.1']
    #allocation5 [shape = 'u8[32768]{0}', space=vmem, size = 0x8000, scoped, tag = 'output window, operand 0']
    %8 = vsyncpa [#allocation3], 0
    %s9 = scalar_lea.sflag [#allocation3], 1
    %10 = vsyncpa %s9, 0
    %11 = vsyncpa [#allocation4], 0
    %s12 = scalar_lea.sflag [#allocation4], 1
    %13 = vsyncpa %s12, 0
    loop: start=0, step=1, limit=5
    $region2: #{tpu_custom_call.1} parent=1 // loop_pre_header
      _
    $region3: #{tpu_custom_call.1} parent=1 // loop_header
      %s15 = sphi 0, %s19
      %p16 = scmp.ge.s32.totalorder %s15, 5
      %s25 = sphi 0, %s27
      %s28 = sphi 0, %s25
      %s29 = sphi 0, %s28
      %s45 = sphi 0, %s29
      %s49 = sphi 0, %s49
      %s51 = sphi 0, %s49
      %s52 = sphi 0, %s51
      %s66 = sphi 0, %s52
      %s70 = sphi 0, %s70
      %s72 = sphi 0, %s70
      %s73 = sphi 0, %s72
      %s87 = sphi 0, %s73
      %s93 = sphi 0, %s95
      %s96 = sphi 0, %s93
      %s97 = sphi 0, %s96
      %s113 = sphi 0, %s97
    $region4: #{tpu_custom_call.1} parent=1 // loop_header_branch
      %18 = sbr.rel (%p16) target = $region8
    $region5: #{tpu_custom_call.1} parent=1 // loop_body
      %s20 = ssub.s32 %s15, 1
      %s21 = ssub.s32 %s15, 2
      %s22 = sadd.s32 %s15, 1
      %s23 = ssub.s32 %s15, %s22
      %p24 = scmp.eq.s32.totalorder %s23, 0
      %s26 = sadd.s32 %s25, 1
      %s27 = scalar_select %p24, %s25, %s26
      %p30 = pneg %p24
      %p31 = scmp.eq.s32.totalorder %s15, 2
      %p32 = por %p30, %p31
      %p33 = scmp.ne.s32.totalorder %s25, %s28
      %p34 = scmp.eq.s32.totalorder %s15, 0
      %p35 = por %p33, %p34
      %p36 = scmp.ne.s32.totalorder %s25, %s28
      %p37 = scmp.eq.s32.totalorder %s20, 2
      %p38 = por %p36, %p37
      %p39 = scmp.ne.s32.totalorder %s28, %s29
      %p40 = scmp.eq.s32.totalorder %s20, 0
      %p41 = por %p39, %p40
      %p42 = scmp.ne.s32.totalorder %s28, %s29
      %p43 = scmp.eq.s32.totalorder %s21, 2
      %p44 = por %p42, %p43
      %p46 = scmp.ne.s32.totalorder %s29, %s45
      %p47 = scmp.eq.s32.totalorder %s21, 0
      %p48 = por %p46, %p47
      %s50 = sadd.s32 %s49, 1
      %p53 = scmp.eq.s32.totalorder %s15, 2
      %p54 = scmp.ne.s32.totalorder %s49, %s51
      %p55 = scmp.eq.s32.totalorder %s15, 0
      %p56 = por %p54, %p55
      %p57 = scmp.ne.s32.totalorder %s49, %s51
      %p58 = scmp.eq.s32.totalorder %s20, 2
      %p59 = por %p57, %p58
      %p60 = scmp.ne.s32.totalorder %s51, %s52
      %p61 = scmp.eq.s32.totalorder %s20, 0
      %p62 = por %p60, %p61
      %p63 = scmp.ne.s32.totalorder %s51, %s52
      %p64 = scmp.eq.s32.totalorder %s21, 2
      %p65 = por %p63, %p64
      %p67 = scmp.ne.s32.totalorder %s52, %s66
      %p68 = scmp.eq.s32.totalorder %s21, 0
      %p69 = por %p67, %p68
      %s71 = sadd.s32 %s70, 1
      %p74 = scmp.eq.s32.totalorder %s15, 2
      %p75 = scmp.ne.s32.totalorder %s70, %s72
      %p76 = scmp.eq.s32.totalorder %s15, 0
      %p77 = por %p75, %p76
      %p78 = scmp.ne.s32.totalorder %s70, %s72
      %p79 = scmp.eq.s32.totalorder %s20, 2
      %p80 = por %p78, %p79
      %p81 = scmp.ne.s32.totalorder %s72, %s73
      %p82 = scmp.eq.s32.totalorder %s20, 0
      %p83 = por %p81, %p82
      %p84 = scmp.ne.s32.totalorder %s72, %s73
      %p85 = scmp.eq.s32.totalorder %s21, 2
      %p86 = por %p84, %p85
      %p88 = scmp.ne.s32.totalorder %s73, %s87
      %p89 = scmp.eq.s32.totalorder %s21, 0
      %p90 = por %p88, %p89
      %s91 = ssub.s32 %s15, %s22
      %p92 = scmp.eq.s32.totalorder %s91, 0
      %s94 = sadd.s32 %s93, 1
      %s95 = scalar_select %p92, %s93, %s94
      %p98 = pneg %p92
      %p99 = scmp.eq.s32.totalorder %s15, 2
      %p100 = por %p98, %p99
      %p101 = scmp.ne.s32.totalorder %s93, %s96
      %p102 = scmp.eq.s32.totalorder %s15, 0
      %p103 = por %p101, %p102
      %p104 = scmp.ne.s32.totalorder %s93, %s96
      %p105 = scmp.eq.s32.totalorder %s20, 2
      %p106 = por %p104, %p105
      %p107 = scmp.ne.s32.totalorder %s96, %s97
      %p108 = scmp.eq.s32.totalorder %s20, 0
      %p109 = por %p107, %p108
      %p110 = scmp.ne.s32.totalorder %s96, %s97
      %p111 = scmp.eq.s32.totalorder %s21, 2
      %p112 = por %p110, %p111
      %p114 = scmp.ne.s32.totalorder %s97, %s113
      %p115 = scmp.eq.s32.totalorder %s21, 0
      %p116 = por %p114, %p115
      %p117 = scmp.le.s32.totalorder 1, %s15
      %p118 = scmp.lt.s32.totalorder %s15, 4
      %p119 = pnand %p117, %p118
      %p120 = pneg %p119
      // Predicated region
      $region9: #{tpu_custom_call.1} parent=5 // pred_check
        _
      $region10: #{tpu_custom_call.1} parent=5 // pred_check_branch
        %122 = sbr.rel (%p119) target = $region12
      $region11: #{tpu_custom_call.1} parent=5 // pred_region
        %s123 = ssub.s32 %s15, 1
        // Predicated region
        $region13: #{tpu_custom_call.1} parent=11 // pred_check
          %p124 = pneg %p62
        $region14: #{tpu_custom_call.1} parent=11 // pred_check_branch
          %126 = sbr.rel (%p124) target = $region16
        $region15: #{tpu_custom_call.1} parent=11 // pred_region
          _
        $region16: #{tpu_custom_call.1} parent=11 // pred_fallthru
          _
        // Predicated region
        $region17: #{tpu_custom_call.1} parent=11 // pred_check
          %p127 = pneg %p83
        $region18: #{tpu_custom_call.1} parent=11 // pred_check_branch
          %129 = sbr.rel (%p127) target = $region20
        $region19: #{tpu_custom_call.1} parent=11 // pred_region
          _
        $region20: #{tpu_custom_call.1} parent=11 // pred_fallthru
          _
      $region12: #{tpu_custom_call.1} parent=5 // pred_fallthru
        _
      %p130 = scmp.lt.s32.totalorder %s15, 3
      // Predicated region
      $region21: #{tpu_custom_call.1} parent=5 // pred_check
        %p131 = pneg %p130
      $region22: #{tpu_custom_call.1} parent=5 // pred_check_branch
        %133 = sbr.rel (%p131) target = $region24
      $region23: #{tpu_custom_call.1} parent=5 // pred_region
        // Predicated region
        $region25: #{tpu_custom_call.1} parent=23 // pred_check
          %p134 = pneg %p35
        $region26: #{tpu_custom_call.1} parent=23 // pred_check_branch
          %136 = sbr.rel (%p134) target = $region28
        $region27: #{tpu_custom_call.1} parent=23 // pred_region
          %s137 = sand.u32 %s25, 1
          %s138 = scalar_lea.sflag [#allocation3], %s137
          %s139 = sand.u32 %s25, 1
          %s140 = smul.addr %s139, 32
          %s141 = scalar_lea.vmem [#allocation2], %s140
          %s142 = smul.u32 2, %s15
          %s143 = ssub.s32 5, %s142
          %p144 = scmp.lt.s32.totalorder %s143, 2
          %s145 = scalar_select %p144, %s143, 2
          %s146 = smul.u32 128, %s145
          %s147 = smul.u32 %s146, 2
          %s149 = ssub.s32 512, %s147
          %150 = vsyncadd %s138, %s149
          %p151 = scmp.ne.s32.totalorder 0, %s147
          %s152 = smul.addr %s142, 2
          %s153 = smul.addr %s152, 128
          %s154 = scalar_lea.hbm %s0, %s153
          %s155 = smul.u32 %s145, 2
          %s156 = smul.u32 8, %s155
          %s157 = sshll.u32 %s141, 4
          %s158 = int_to_ptr.vmem [resolvable:$true] %s157
          %s159 = sshll.u32 %s156, 4
          %163 = dma.hbm_to_vmem [thread:$0]  (%p151), %s154, %s159, %s158, %s138, 128, 128, 8
        $region28: #{tpu_custom_call.1} parent=23 // pred_fallthru
          _
      $region24: #{tpu_custom_call.1} parent=5 // pred_fallthru
        _
      %p164 = scmp.le.s32.totalorder 1, %s15
      %p165 = scmp.lt.s32.totalorder %s15, 4
      %p166 = pnand %p164, %p165
      %p167 = pneg %p166
      // Predicated region
      $region29: #{tpu_custom_call.1} parent=5 // pred_check
        _
      $region30: #{tpu_custom_call.1} parent=5 // pred_check_branch
        %169 = sbr.rel (%p166) target = $region32
      $region31: #{tpu_custom_call.1} parent=5 // pred_region
        %s170 = ssub.s32 %s15, 1
        %s171 = sand.u32 %s28, 1
        %s172 = scalar_lea.sflag [#allocation3], %s171
        %s173 = sand.u32 %s28, 1
        %s174 = smul.addr %s173, 32
        %s175 = scalar_lea.vmem [#allocation2], %s174
        // Predicated region
        $region33: #{tpu_custom_call.1} parent=31 // pred_check
          %p176 = pneg %p41
        $region34: #{tpu_custom_call.1} parent=31 // pred_check_branch
          %178 = sbr.rel (%p176) target = $region36
        $region35: #{tpu_custom_call.1} parent=31 // pred_region
          %179 = dma.done %s172, 512
        $region36: #{tpu_custom_call.1} parent=31 // pred_fallthru
          _
        %s180 = sand.u32 %s28, 1
        %s181 = scalar_lea.sflag [#allocation3], %s180
        %s182 = sand.u32 %s28, 1
        %s183 = smul.addr %s182, 32
        %s184 = scalar_lea.vmem [#allocation2], %s183
        %p185 = pneg %p41
        %p186 = pneg %p38
        %p187 = pneg %p62
        %p188 = pneg %p59
        %p189 = pneg %p83
        %p190 = pneg %p80
        %p191 = pneg %p109
        %p192 = pneg %p106
        %s193 = sand.u32 %s96, 1
        %s194 = scalar_lea.sflag [#allocation4], %s193
        %s195 = sand.u32 %s96, 1
        %s196 = smul.addr %s195, 32
        %s197 = scalar_lea.vmem [#allocation5], %s196
        %s198 = smul.u32 2, %s20
        %s199 = ssub.s32 5, %s198
        %p200 = scmp.lt.s32.totalorder %s199, 2
        %s201 = scalar_select %p200, %s199, 2
        %s202 = smul.u32 128, %s201
        %s203 = smul.u32 %s202, 2
        %s204 = smul.u32 2, %s20
        %s205 = ssub.s32 5, %s204
        %p206 = scmp.lt.s32.totalorder %s205, 2
        %s207 = scalar_select %p206, %s205, 2
        %s208 = smul.u32 128, %s207
        %s209 = smul.u32 %s208, 2
        %v210 = vld [vmem:[%s1] sm:$0xff]
        %v211 = vld [vmem:[%s2] sm:$0xff]
        %v212 = vld [vmem:[%s2 + $0x8] sm:$0xff]
        %v213 = vld [vmem:[%s2 + $0x10] sm:$0xff]
        %v214 = vld [vmem:[%s2 + $0x18] sm:$0xff]
        %v215 = vld [vmem:[%s175] sm:$0xff]
        %v216 = vld [vmem:[%s175 + $0x8] sm:$0x7f]
        %vm217 = vcmask 261120
        %v219 = vsel %vm217, %v215, 0
        %v222 = vsel %vm217, %v216, 0
        %v225 = vsel %vm217, %v210, 0
        %227 = vmatprep.subr.mxu0 0.0
        %228 = vmatpush1.xpose.msra.mxu0 %v225
        %229 = vmatprep.subr.mxu0 0.0
        %230 = vmatpush1.xpose.msra.mxu0 0.0
        %231 = vmatprep.subr.mxu0 0.0
        %232 = vmatpush1.xpose.msra.mxu0 0.0
        %233 = vmatprep.subr.mxu0 0.0
        %234 = vmatpush1.xpose.msra.mxu0 0.0
        %235 = vmatprep.subr.mxu0 0.0
        %236 = vmatpush1.xpose.msra.mxu0 0.0
        %237 = vmatprep.subr.mxu0 0.0
        %238 = vmatpush1.xpose.msra.mxu0 0.0
        %239 = vmatprep.subr.mxu0 0.0
        %240 = vmatpush1.xpose.msra.mxu0 0.0
        %241 = vmatprep.subr.mxu0 0.0
        %242 = vmatpush1.xpose.msra.mxu0 0.0
        %243 = vmatprep.subr.mxu0 0.0
        %244 = vmatpush1.xpose.msra.mxu0 0.0
        %245 = vmatprep.subr.mxu0 0.0
        %246 = vmatpush1.xpose.msra.mxu0 0.0
        %247 = vmatprep.subr.mxu0 0.0
        %248 = vmatpush1.xpose.msra.mxu0 0.0
        %249 = vmatprep.subr.mxu0 0.0
        %250 = vmatpush1.xpose.msra.mxu0 0.0
        %251 = vmatprep.subr.mxu0 0.0
        %252 = vmatpush1.xpose.msra.mxu0 0.0
        %253 = vmatprep.subr.mxu0 0.0
        %254 = vmatpush1.xpose.msra.mxu0 0.0
        %255 = vmatprep.subr.mxu0 0.0
        %256 = vmatpush1.xpose.msra.mxu0 0.0
        %257 = vmatprep.subr.mxu0 0.0
        %258 = vmatpush1.xpose.msra.mxu0 0.0
        %259 = vmatprep.subr.mxu0 0.0
        %260 = vmatpush1.xpose.msra.mxu0 0.0
        %261 = vmatprep.subr.mxu0 0.0
        %262 = vmatpush1.xpose.msra.mxu0 0.0
        %263 = vmatprep.subr.mxu0 0.0
        %264 = vmatpush1.xpose.msra.mxu0 0.0
        %265 = vmatprep.subr.mxu0 0.0
        %266 = vmatpush1.xpose.msra.mxu0 0.0
        %267 = vmatprep.subr.mxu0 0.0
        %268 = vmatpush1.xpose.msra.mxu0 0.0
        %269 = vmatprep.subr.mxu0 0.0
        %270 = vmatpush1.xpose.msra.mxu0 0.0
        %271 = vmatprep.subr.mxu0 0.0
        %272 = vmatpush1.xpose.msra.mxu0 0.0
        %273 = vmatprep.subr.mxu0 0.0
        %274 = vmatpush1.xpose.msra.mxu0 0.0
        %275 = vmatprep.subr.mxu0 0.0
        %276 = vmatpush1.xpose.msra.mxu0 0.0
        %277 = vmatprep.subr.mxu0 0.0
        %278 = vmatpush1.xpose.msra.mxu0 0.0
        %279 = vmatprep.subr.mxu0 0.0
        %280 = vmatpush1.xpose.msra.mxu0 0.0
        %281 = vmatprep.subr.mxu0 0.0
        %282 = vmatpush1.xpose.msra.mxu0 0.0
        %283 = vmatprep.subr.mxu0 0.0
        %284 = vmatpush1.xpose.msra.mxu0 0.0
        %285 = vmatprep.subr.mxu0 0.0
        %286 = vmatpush1.xpose.msra.mxu0 0.0
        %287 = vmatprep.subr.mxu0 0.0
        %288 = vmatpush1.xpose.msra.mxu0 0.0
        %289 = vmatprep.subr.mxu0 0.0
        %290 = vmatpush1.xpose.msra.mxu0 0.0
        %291 = vmatprep.mubr.f32.mxu0 0.0
        %292 = vmatmul.mubr.f32.gmra.mrb[0].mxu0 %v219
        %v293 = vpop.f32.mrb[0].mxu0
        %v294 = vadd.f32 0.0, %v293
        %v295 = vpop.f32.mrb[0].mxu0
        %296 = vmatprep.mubr.f32.mxu0 0.0
        %297 = vmatmul.mubr.f32.gmra.mrb[0].mxu0 %v222
        %v298 = vpop.f32.mrb[0].mxu0
        %v299 = vadd.f32 0.0, %v298
        %v300 = vpop.f32.mrb[0].mxu0
        %301 = vdwg.mxu0
        %vm302 = vcmask 64512
        %v303 = vsel %vm302, %v294, -inf
        %vm304 = vcmask 63488
        %v305 = vsel %vm304, %v299, -inf
        %v306 = vmax.f32 %v303, %v305
        %v307 = vrot.slane %v306, 4
        %v308 = vmax.f32 %v306, %v307
        %v309 = vrot.slane %v308, 2
        %v310 = vmax.f32 %v308, %v309
        %v311 = vrot.slane %v310, 1
        %v312 = vmax.f32 %v310, %v311
        %v313 = vsub.f32 %v294, %v312
        %v314 = vsub.f32 %v299, %v312
        %v315 = vmul.f32 %v313, 1.442695
        %v316 = vpow.pop %v315
        %v317 = vmul.f32 %v314, 1.442695
        %v318 = vpow.pop %v317
        %v319 = vsel %vm302, %v316, 0.0
        %v320 = vsel %vm304, %v318, 0.0
        %v321 = vadd.f32 %v319, %v320
        %v322 = vrot.slane %v321, 4
        %v323 = vadd.f32 %v321, %v322
        %v324 = vrot.slane %v323, 2
        %v325 = vadd.f32 %v323, %v324
        %v326 = vrot.slane %v325, 1
        %v327 = vadd.f32 %v325, %v326
        %v328 = vrcp.pop %v327
        %v329 = vmul.f32 %v316, %v328
        %v330 = vmul.f32 %v318, %v328
        %v331 = vsel %vm302, %v329, 0.0
        %332 = vadd.xlane.f32.xlu0 %v331
        %v333 = vpop.xlane.xlu0 %332
        %v334 = vsel %vm304, %v330, 0.0
        %335 = vadd.xlane.f32.xlu0 %v334
        %v336 = vpop.xlane.xlu0 %335
        %v337 = vrcp.pop %v333
        %v338 = vrcp.pop %v336
        %v339 = vmul.f32 %v329, %v337
        %v340 = vmul.f32 %v330, %v338
        %v342 = vsel %vm302, %v339, 0
        %v345 = vsel %vm302, %v340, 0
        %v348 = vsel %vm302, %v211, 0
        %v351 = vsel %vm302, %v212, 0
        %v354 = vsel %vm302, %v213, 0
        %v357 = vsel %vm302, %v214, 0
        %359 = vmatprep.subr.mxu0 0.0
        %360 = vmatpush1.xpose.msra.mxu0 %v348
        %361 = vmatprep.subr.mxu0 0.0
        %362 = vmatpush1.xpose.msra.mxu0 %v351
        %363 = vmatprep.subr.mxu0 0.0
        %364 = vmatpush1.xpose.msra.mxu0 %v354
        %365 = vmatprep.subr.mxu0 0.0
        %366 = vmatpush1.xpose.msra.mxu0 %v357
        %367 = vmatprep.subr.mxu0 0.0
        %368 = vmatpush1.xpose.msra.mxu0 0.0
        %369 = vmatprep.subr.mxu0 0.0
        %370 = vmatpush1.xpose.msra.mxu0 0.0
        %371 = vmatprep.subr.mxu0 0.0
        %372 = vmatpush1.xpose.msra.mxu0 0.0
        %373 = vmatprep.subr.mxu0 0.0
        %374 = vmatpush1.xpose.msra.mxu0 0.0
        %375 = vmatprep.subr.mxu0 0.0
        %376 = vmatpush1.xpose.msra.mxu0 0.0
        %377 = vmatprep.subr.mxu0 0.0
        %378 = vmatpush1.xpose.msra.mxu0 0.0
        %379 = vmatprep.subr.mxu0 0.0
        %380 = vmatpush1.xpose.msra.mxu0 0.0
        %381 = vmatprep.subr.mxu0 0.0
        %382 = vmatpush1.xpose.msra.mxu0 0.0
        %383 = vmatprep.subr.mxu0 0.0
        %384 = vmatpush1.xpose.msra.mxu0 0.0
        %385 = vmatprep.subr.mxu0 0.0
        %386 = vmatpush1.xpose.msra.mxu0 0.0
        %387 = vmatprep.subr.mxu0 0.0
        %388 = vmatpush1.xpose.msra.mxu0 0.0
        %389 = vmatprep.subr.mxu0 0.0
        %390 = vmatpush1.xpose.msra.mxu0 0.0
        %391 = vmatprep.subr.mxu0 0.0
        %392 = vmatpush1.xpose.msra.mxu0 0.0
        %393 = vmatprep.subr.mxu0 0.0
        %394 = vmatpush1.xpose.msra.mxu0 0.0
        %395 = vmatprep.subr.mxu0 0.0
        %396 = vmatpush1.xpose.msra.mxu0 0.0
        %397 = vmatprep.subr.mxu0 0.0
        %398 = vmatpush1.xpose.msra.mxu0 0.0
        %399 = vmatprep.subr.mxu0 0.0
        %400 = vmatpush1.xpose.msra.mxu0 0.0
        %401 = vmatprep.subr.mxu0 0.0
        %402 = vmatpush1.xpose.msra.mxu0 0.0
        %403 = vmatprep.subr.mxu0 0.0
        %404 = vmatpush1.xpose.msra.mxu0 0.0
        %405 = vmatprep.subr.mxu0 0.0
        %406 = vmatpush1.xpose.msra.mxu0 0.0
        %407 = vmatprep.subr.mxu0 0.0
        %408 = vmatpush1.xpose.msra.mxu0 0.0
        %409 = vmatprep.subr.mxu0 0.0
        %410 = vmatpush1.xpose.msra.mxu0 0.0
        %411 = vmatprep.subr.mxu0 0.0
        %412 = vmatpush1.xpose.msra.mxu0 0.0
        %413 = vmatprep.subr.mxu0 0.0
        %414 = vmatpush1.xpose.msra.mxu0 0.0
        %415 = vmatprep.subr.mxu0 0.0
        %416 = vmatpush1.xpose.msra.mxu0 0.0
        %417 = vmatprep.subr.mxu0 0.0
        %418 = vmatpush1.xpose.msra.mxu0 0.0
        %419 = vmatprep.subr.mxu0 0.0
        %420 = vmatpush1.xpose.msra.mxu0 0.0
        %421 = vmatprep.subr.mxu0 0.0
        %422 = vmatpush1.xpose.msra.mxu0 0.0
        %423 = vmatprep.mubr.f32.mxu0 0.0
        %424 = vmatmul.mubr.f32.gmra.mrb[0].mxu0 %v342
        %v425 = vpop.f32.mrb[0].mxu0
        %v426 = vadd.f32 0.0, %v425
        %v427 = vpop.f32.mrb[0].mxu0
        %428 = vmatprep.mubr.f32.mxu0 0.0
        %429 = vmatmul.mubr.f32.gmra.mrb[0].mxu0 %v345
        %v430 = vpop.f32.mrb[0].mxu0
        %v431 = vadd.f32 0.0, %v430
        %v432 = vpop.f32.mrb[0].mxu0
        %433 = vdwg.mxu0
        %434 = vst.msk [vmem:[%s197] sm:$0xff] %vm217, %v426
        %vm435 = vcmask 260096
        %436 = vst.msk [vmem:[%s197 + $0x8] sm:$0x7f] %vm435, %v431
        %s437 = scalar_lea.vmem %s175, 16 [#allocation2]
        %v438 = vld [vmem:[%s437] sm:$0xff]
        %v439 = vld [vmem:[%s437 + $0x8] sm:$0x7f]
        %v441 = vsel %vm217, %v438, 0
        %v444 = vsel %vm217, %v439, 0
        %446 = vmatprep.subr.mxu0 0.0
        %447 = vmatpush1.xpose.msra.mxu0 %v225
        %448 = vmatprep.subr.mxu0 0.0
        %449 = vmatpush1.xpose.msra.mxu0 0.0
        %450 = vmatprep.subr.mxu0 0.0
        %451 = vmatpush1.xpose.msra.mxu0 0.0
        %452 = vmatprep.subr.mxu0 0.0
        %453 = vmatpush1.xpose.msra.mxu0 0.0
        %454 = vmatprep.subr.mxu0 0.0
        %455 = vmatpush1.xpose.msra.mxu0 0.0
        %456 = vmatprep.subr.mxu0 0.0
        %457 = vmatpush1.xpose.msra.mxu0 0.0
        %458 = vmatprep.subr.mxu0 0.0
        %459 = vmatpush1.xpose.msra.mxu0 0.0
        %460 = vmatprep.subr.mxu0 0.0
        %461 = vmatpush1.xpose.msra.mxu0 0.0
        %462 = vmatprep.subr.mxu0 0.0
        %463 = vmatpush1.xpose.msra.mxu0 0.0
        %464 = vmatprep.subr.mxu0 0.0
        %465 = vmatpush1.xpose.msra.mxu0 0.0
        %466 = vmatprep.subr.mxu0 0.0
        %467 = vmatpush1.xpose.msra.mxu0 0.0
        %468 = vmatprep.subr.mxu0 0.0
        %469 = vmatpush1.xpose.msra.mxu0 0.0
        %470 = vmatprep.subr.mxu0 0.0
        %471 = vmatpush1.xpose.msra.mxu0 0.0
        %472 = vmatprep.subr.mxu0 0.0
        %473 = vmatpush1.xpose.msra.mxu0 0.0
        %474 = vmatprep.subr.mxu0 0.0
        %475 = vmatpush1.xpose.msra.mxu0 0.0
        %476 = vmatprep.subr.mxu0 0.0
        %477 = vmatpush1.xpose.msra.mxu0 0.0
        %478 = vmatprep.subr.mxu0 0.0
        %479 = vmatpush1.xpose.msra.mxu0 0.0
        %480 = vmatprep.subr.mxu0 0.0
        %481 = vmatpush1.xpose.msra.mxu0 0.0
        %482 = vmatprep.subr.mxu0 0.0
        %483 = vmatpush1.xpose.msra.mxu0 0.0
        %484 = vmatprep.subr.mxu0 0.0
        %485 = vmatpush1.xpose.msra.mxu0 0.0
        %486 = vmatprep.subr.mxu0 0.0
        %487 = vmatpush1.xpose.msra.mxu0 0.0
        %488 = vmatprep.subr.mxu0 0.0
        %489 = vmatpush1.xpose.msra.mxu0 0.0
        %490 = vmatprep.subr.mxu0 0.0
        %491 = vmatpush1.xpose.msra.mxu0 0.0
        %492 = vmatprep.subr.mxu0 0.0
        %493 = vmatpush1.xpose.msra.mxu0 0.0
        %494 = vmatprep.subr.mxu0 0.0
        %495 = vmatpush1.xpose.msra.mxu0 0.0
        %496 = vmatprep.subr.mxu0 0.0
        %497 = vmatpush1.xpose.msra.mxu0 0.0
        %498 = vmatprep.subr.mxu0 0.0
        %499 = vmatpush1.xpose.msra.mxu0 0.0
        %500 = vmatprep.subr.mxu0 0.0
        %501 = vmatpush1.xpose.msra.mxu0 0.0
        %502 = vmatprep.subr.mxu0 0.0
        %503 = vmatpush1.xpose.msra.mxu0 0.0
        %504 = vmatprep.subr.mxu0 0.0
        %505 = vmatpush1.xpose.msra.mxu0 0.0
        %506 = vmatprep.subr.mxu0 0.0
        %507 = vmatpush1.xpose.msra.mxu0 0.0
        %508 = vmatprep.subr.mxu0 0.0
        %509 = vmatpush1.xpose.msra.mxu0 0.0
        %510 = vmatprep.mubr.f32.mxu0 0.0
        %511 = vmatmul.mubr.f32.gmra.mrb[0].mxu0 %v441
        %v512 = vpop.f32.mrb[0].mxu0
        %v513 = vadd.f32 0.0, %v512
        %v514 = vpop.f32.mrb[0].mxu0
        %515 = vmatprep.mubr.f32.mxu0 0.0
        %516 = vmatmul.mubr.f32.gmra.mrb[0].mxu0 %v444
        %v517 = vpop.f32.mrb[0].mxu0
        %v518 = vadd.f32 0.0, %v517
        %v519 = vpop.f32.mrb[0].mxu0
        %520 = vdwg.mxu0
        %v521 = vsel %vm302, %v513, -inf
        %v522 = vsel %vm304, %v518, -inf
        %v523 = vmax.f32 %v521, %v522
        %v524 = vrot.slane %v523, 4
        %v525 = vmax.f32 %v523, %v524
        %v526 = vrot.slane %v525, 2
        %v527 = vmax.f32 %v525, %v526
        %v528 = vrot.slane %v527, 1
        %v529 = vmax.f32 %v527, %v528
        %v530 = vsub.f32 %v513, %v529
        %v531 = vsub.f32 %v518, %v529
        %v532 = vmul.f32 %v530, 1.442695
        %v533 = vpow.pop %v532
        %v534 = vmul.f32 %v531, 1.442695
        %v535 = vpow.pop %v534
        %v536 = vsel %vm302, %v533, 0.0
        %v537 = vsel %vm304, %v535, 0.0
        %v538 = vadd.f32 %v536, %v537
        %v539 = vrot.slane %v538, 4
        %v540 = vadd.f32 %v538, %v539
        %v541 = vrot.slane %v540, 2
        %v542 = vadd.f32 %v540, %v541
        %v543 = vrot.slane %v542, 1
        %v544 = vadd.f32 %v542, %v543
        %v545 = vrcp.pop %v544
        %v546 = vmul.f32 %v533, %v545
        %v547 = vmul.f32 %v535, %v545
        %v548 = vsel %vm302, %v546, 0.0
        %549 = vadd.xlane.f32.xlu0 %v548
        %v550 = vpop.xlane.xlu0 %549
        %v551 = vsel %vm304, %v547, 0.0
        %552 = vadd.xlane.f32.xlu0 %v551
        %v553 = vpop.xlane.xlu0 %552
        %v554 = vrcp.pop %v550
        %v555 = vrcp.pop %v553
        %v556 = vmul.f32 %v546, %v554
        %v557 = vmul.f32 %v547, %v555
        %v559 = vsel %vm302, %v556, 0
        %v562 = vsel %vm302, %v557, 0
        %564 = vmatprep.subr.mxu0 0.0
        %565 = vmatpush1.xpose.msra.mxu0 %v348
        %566 = vmatprep.subr.mxu0 0.0
        %567 = vmatpush1.xpose.msra.mxu0 %v351
        %568 = vmatprep.subr.mxu0 0.0
        %569 = vmatpush1.xpose.msra.mxu0 %v354
        %570 = vmatprep.subr.mxu0 0.0
        %571 = vmatpush1.xpose.msra.mxu0 %v357
        %572 = vmatprep.subr.mxu0 0.0
        %573 = vmatpush1.xpose.msra.mxu0 0.0
        %574 = vmatprep.subr.mxu0 0.0
        %575 = vmatpush1.xpose.msra.mxu0 0.0
        %576 = vmatprep.subr.mxu0 0.0
        %577 = vmatpush1.xpose.msra.mxu0 0.0
        %578 = vmatprep.subr.mxu0 0.0
        %579 = vmatpush1.xpose.msra.mxu0 0.0
        %580 = vmatprep.subr.mxu0 0.0
        %581 = vmatpush1.xpose.msra.mxu0 0.0
        %582 = vmatprep.subr.mxu0 0.0
        %583 = vmatpush1.xpose.msra.mxu0 0.0
        %584 = vmatprep.subr.mxu0 0.0
        %585 = vmatpush1.xpose.msra.mxu0 0.0
        %586 = vmatprep.subr.mxu0 0.0
        %587 = vmatpush1.xpose.msra.mxu0 0.0
        %588 = vmatprep.subr.mxu0 0.0
        %589 = vmatpush1.xpose.msra.mxu0 0.0
        %590 = vmatprep.subr.mxu0 0.0
        %591 = vmatpush1.xpose.msra.mxu0 0.0
        %592 = vmatprep.subr.mxu0 0.0
        %593 = vmatpush1.xpose.msra.mxu0 0.0
        %594 = vmatprep.subr.mxu0 0.0
        %595 = vmatpush1.xpose.msra.mxu0 0.0
        %596 = vmatprep.subr.mxu0 0.0
        %597 = vmatpush1.xpose.msra.mxu0 0.0
        %598 = vmatprep.subr.mxu0 0.0
        %599 = vmatpush1.xpose.msra.mxu0 0.0
        %600 = vmatprep.subr.mxu0 0.0
        %601 = vmatpush1.xpose.msra.mxu0 0.0
        %602 = vmatprep.subr.mxu0 0.0
        %603 = vmatpush1.xpose.msra.mxu0 0.0
        %604 = vmatprep.subr.mxu0 0.0
        %605 = vmatpush1.xpose.msra.mxu0 0.0
        %606 = vmatprep.subr.mxu0 0.0
        %607 = vmatpush1.xpose.msra.mxu0 0.0
        %608 = vmatprep.subr.mxu0 0.0
        %609 = vmatpush1.xpose.msra.mxu0 0.0
        %610 = vmatprep.subr.mxu0 0.0
        %611 = vmatpush1.xpose.msra.mxu0 0.0
        %612 = vmatprep.subr.mxu0 0.0
        %613 = vmatpush1.xpose.msra.mxu0 0.0
        %614 = vmatprep.subr.mxu0 0.0
        %615 = vmatpush1.xpose.msra.mxu0 0.0
        %616 = vmatprep.subr.mxu0 0.0
        %617 = vmatpush1.xpose.msra.mxu0 0.0
        %618 = vmatprep.subr.mxu0 0.0
        %619 = vmatpush1.xpose.msra.mxu0 0.0
        %620 = vmatprep.subr.mxu0 0.0
        %621 = vmatpush1.xpose.msra.mxu0 0.0
        %622 = vmatprep.subr.mxu0 0.0
        %623 = vmatpush1.xpose.msra.mxu0 0.0
        %624 = vmatprep.subr.mxu0 0.0
        %625 = vmatpush1.xpose.msra.mxu0 0.0
        %626 = vmatprep.subr.mxu0 0.0
        %627 = vmatpush1.xpose.msra.mxu0 0.0
        %628 = vmatprep.mubr.f32.mxu0 0.0
        %629 = vmatmul.mubr.f32.gmra.mrb[0].mxu0 %v559
        %v630 = vpop.f32.mrb[0].mxu0
        %v631 = vadd.f32 0.0, %v630
        %v632 = vpop.f32.mrb[0].mxu0
        %633 = vmatprep.mubr.f32.mxu0 0.0
        %634 = vmatmul.mubr.f32.gmra.mrb[0].mxu0 %v562
        %v635 = vpop.f32.mrb[0].mxu0
        %v636 = vadd.f32 0.0, %v635
        %v637 = vpop.f32.mrb[0].mxu0
        %638 = vdwg.mxu0
        %s639 = scalar_lea.vmem %s197, 16 [#allocation5]
        %640 = vst.msk [vmem:[%s639] sm:$0xff] %vm217, %v631
        %641 = vst.msk [vmem:[%s639 + $0x8] sm:$0x7f] %vm435, %v636
        %s642 = sand.u32 %s96, 1
        %s643 = scalar_lea.sflag [#allocation4], %s642
        %s644 = sand.u32 %s96, 1
        %s645 = smul.addr %s644, 32
        %s646 = scalar_lea.vmem [#allocation5], %s645
        // Predicated region
        $region37: #{tpu_custom_call.1} parent=31 // pred_check
          %p647 = pneg %p106
        $region38: #{tpu_custom_call.1} parent=31 // pred_check_branch
          %649 = sbr.rel (%p647) target = $region40
        $region39: #{tpu_custom_call.1} parent=31 // pred_region
          %s650 = smul.u32 2, %s20
          %s651 = ssub.s32 5, %s650
          %p652 = scmp.lt.s32.totalorder %s651, 2
          %s653 = scalar_select %p652, %s651, 2
          %s654 = smul.u32 128, %s653
          %s655 = smul.u32 %s654, 2
          %s657 = ssub.s32 512, %s655
          %658 = vsyncadd %s643, %s657
          %p659 = scmp.ne.s32.totalorder 0, %s655
          %s660 = smul.addr %s650, 2
          %s661 = smul.addr %s660, 128
          %s662 = scalar_lea.hbm %s3, %s661
          %s663 = smul.u32 %s653, 2
          %s664 = smul.u32 8, %s663
          %s665 = sshll.u32 %s646, 4
          %s666 = int_to_ptr.vmem [resolvable:$true] %s665
          %s667 = sshll.u32 %s664, 4
          %671 = dma.vmem_to_hbm [thread:$0]  (%p659), %s666, %s667, %s662, %s643, 128, 128, 8
        $region40: #{tpu_custom_call.1} parent=31 // pred_fallthru
          _
      $region32: #{tpu_custom_call.1} parent=5 // pred_fallthru
        _
      %p672 = scmp.le.s32.totalorder 2, %s15
      // Predicated region
      $region41: #{tpu_custom_call.1} parent=5 // pred_check
        %p673 = pneg %p672
      $region42: #{tpu_custom_call.1} parent=5 // pred_check_branch
        %675 = sbr.rel (%p673) target = $region44
      $region43: #{tpu_custom_call.1} parent=5 // pred_region
        %s676 = ssub.s32 %s15, 2
        // Predicated region
        $region45: #{tpu_custom_call.1} parent=43 // pred_check
          %p677 = pneg %p112
        $region46: #{tpu_custom_call.1} parent=43 // pred_check_branch
          %679 = sbr.rel (%p677) target = $region48
        $region47: #{tpu_custom_call.1} parent=43 // pred_region
          %s680 = sand.u32 %s97, 1
          %s681 = scalar_lea.sflag [#allocation4], %s680
          %s682 = sand.u32 %s97, 1
          %s683 = smul.addr %s682, 32
          %s684 = scalar_lea.vmem [#allocation5], %s683
          %685 = dma.done %s681, 512
        $region48: #{tpu_custom_call.1} parent=43 // pred_fallthru
          _
      $region44: #{tpu_custom_call.1} parent=5 // pred_fallthru
        _
    $region6: #{tpu_custom_call.1} parent=1 // loop_footer
      %s19 = sadd.s32 1, %s15
    $region7: #{tpu_custom_call.1} parent=1 // loop_footer_branch
      %14 = sbr.rel target = $region3
    $region8: #{tpu_custom_call.1} parent=1 // loop_exit
      _
    %686 = vsyncpa [#allocation3], 1
    %s687 = scalar_lea.sflag [#allocation3], 1
    %688 = vsyncpa %s687, 1
    %689 = vsyncpa [#allocation4], 1
    %s690 = scalar_lea.sflag [#allocation4], 1
    %691 = vsyncpa %s690, 1

</llo_original>
